<compile_context>
chip_gen: v5e
topology: v5e:2x2
jax: 0.10.0
libtpu: 0.0.40
codegen_flags: <defaults>
</compile_context>

<pallas_src>
import functools

import jax
import jax.numpy as jnp
from jax.experimental import pallas as pl
from jax.experimental.pallas import tpu as pltpu


def _round_up(x, m):
    return ((x + m - 1) // m) * m


def _cdiv(a, b):
    return (a + b - 1) // b


def _q_head_kernel(n_layers, h_ref, *refs):
    """refs = (w_0, b_0, ..., w_{L-1}, b_{L-1}, mask_ref, out_ref).

    h_ref   : [tile_rows, G*H]       f32/bf16 (caller dtype)
    w_l     : [G*in_l, G*out_l]      bf16   block-diag kron(I_G, W_l)
    b_l     : [1, G*out_l]           f32
    mask_ref: [tile_rows, G]         int8   (nonzero == masked)
    out_ref : [tile_rows, G]         f32
    """
    mask_ref = refs[-2]
    out_ref = refs[-1]
    wb = refs[:-2]

    # bf16 narrowing happens here (VPU), not as an extra HBM pass in the wrapper.
    x = h_ref[...].astype(jnp.bfloat16)
    q = None
    for l in range(n_layers):
        w = wb[2 * l][...]                            # bf16 [G*in, G*out]
        b = wb[2 * l + 1][...]                        # f32  [1, G*out]
        y = jnp.dot(x, w, preferred_element_type=jnp.float32) + b
        if l < n_layers - 1:
            # ReLU in f32; re-narrow to bf16 only as the next MXU operand.
            x = jnp.maximum(y, 0.0).astype(jnp.bfloat16)
        else:
            q = y                                     # f32 [tile_rows, G]

    mask = mask_ref[...]                              # int8 [tile_rows, G]
    out_ref[...] = jnp.where(mask != 0, jnp.float32(1.0e9), q)


def _mlp_reference(h, weights, biases):
    """Pure-JAX f32 reference MLP (mirrors the PyTorch q_predictor)."""
    x = h.astype(jnp.float32)
    for l, (w, b) in enumerate(zip(weights, biases)):
        x = x @ w.astype(jnp.float32) + b.astype(jnp.float32)
        if l < len(weights) - 1:
            x = jnp.maximum(x, 0.0)
    return x[:, 0]


def regressor_single_head_forward(new_h, alpha, new_cov, h_tilde,
                                  view_index_mask, weights, biases, *,
                                  pack=8, max_rows_per_tile=2048,
                                  min_pallas_batch=1024):
    """Pallas implementation of RegressorSingleHead.forward.

    weights: list (per MLP layer) of [in_dim, out_dim] arrays (PyTorch W.T).
    biases : list (per MLP layer) of [out_dim] arrays.
    Returns (new_h, alpha, q_value, new_cov); q_value has shape (B,).
    """
    B, H = h_tilde.shape
    n_layers = len(weights)

    # Small-B fast path: pallas_call launch/DMA setup dwarfs <1us of math.
    if B < min_pallas_batch:
        q = _mlp_reference(h_tilde, weights, biases)
        if view_index_mask is not None:
            q = jnp.where(view_index_mask.reshape(-1), jnp.float32(1.0e9), q)
        return new_h, alpha, q.astype(h_tilde.dtype), new_cov

    # --- Row packing: view h as [rows, G*H] (free contiguous reshape). ---
    G = pack
    rows_total = _cdiv(B, G)
    tile_rows = min(_round_up(rows_total, 8), max_rows_per_tile)
    num_tiles = _cdiv(rows_total, tile_rows)
    rows_pad = num_tiles * tile_rows
    B_pad = rows_pad * G

    if view_index_mask is None:
        mask_flat = jnp.zeros((B,), jnp.int8)
    else:
        mask_flat = view_index_mask.reshape(-1).astype(jnp.int8)

    h = h_tilde
    if B_pad != B:                                    # only when B doesn't divide
        h = jnp.pad(h, ((0, B_pad - B), (0, 0)))
        mask_flat = jnp.pad(mask_flat, (0, B_pad - B))

    h_packed = h.reshape(rows_pad, G * H)             # bitcast-style reshape
    mask_packed = mask_flat.reshape(rows_pad, G)

    args = [h_packed]
    in_specs = [pl.BlockSpec((tile_rows, G * H), lambda i: (i, 0))]

    flops = 0
    weight_bytes = 0
    for w, b in zip(weights, biases):
        din, dout = w.shape
        # Block-diagonal packed weight: column block j of the output is
        # h[G*r + j, :] @ W_l, i.e. G independent rows per packed row.
        wp = jnp.kron(jnp.eye(G, dtype=jnp.float32),
                      w.astype(jnp.float32)).astype(jnp.bfloat16)
        bp = jnp.tile(b.astype(jnp.float32), G).reshape(1, G * dout)
        args.append(wp)
        in_specs.append(pl.BlockSpec(wp.shape, lambda i: (0, 0)))  # VMEM-resident
        args.append(bp)
        in_specs.append(pl.BlockSpec(bp.shape, lambda i: (0, 0)))
        flops += 2 * B_pad * din * dout
        weight_bytes += wp.size * 2 + bp.size * 4

    args.append(mask_packed)
    in_specs.append(pl.BlockSpec((tile_rows, G), lambda i: (i, 0)))

    bytes_accessed = (h_packed.size * h_packed.dtype.itemsize
                      + mask_packed.size                      # int8
                      + rows_pad * G * 4                      # f32 output
                      + weight_bytes)

    kernel = functools.partial(_q_head_kernel, n_layers)
    q_packed = pl.pallas_call(
        kernel,
        out_shape=jax.ShapeDtypeStruct((rows_pad, G), jnp.float32),
        grid=(num_tiles,),
        in_specs=in_specs,
        out_specs=pl.BlockSpec((tile_rows, G), lambda i: (i, 0)),
        compiler_params=pltpu.CompilerParams(
            dimension_semantics=("parallel",)),
        cost_estimate=pl.CostEstimate(flops=flops, transcendentals=0,
                                      bytes_accessed=bytes_accessed),
    )(*args)

    # (rows_pad, G) -> (B_pad,) -> (B,) : row order is preserved by the packing.
    q_value = q_packed.reshape(-1)[:B].astype(h_tilde.dtype)
    return new_h, alpha, q_value, new_cov


if __name__ == "__main__":
    # hparams: hidden_size=32, num_q_predictor_layers=3
    hidden_size = 32
    num_q_predictor_layers = 3

    # Layer dimension schedule: 32 -> 16 (ReLU) -> 8 (ReLU) -> 1
    dims = []
    cur = hidden_size
    for _ in range(num_q_predictor_layers - 1):
        dims.append((cur, cur // 2))
        cur = cur // 2
    dims.append((cur, 1))

    key = jax.random.PRNGKey(0)
    keys = iter(jax.random.split(key, 2 * len(dims) + 16))

    weights, biases = [], []
    for (din, dout) in dims:
        scale = 1.0 / jnp.sqrt(jnp.float32(din))
        weights.append(jax.random.uniform(next(keys), (din, dout), jnp.float32,
                                          -scale, scale))
        biases.append(jax.random.uniform(next(keys), (dout,), jnp.float32,
                                         -scale, scale))

    def run_case(B, **kw):
        kb = iter(jax.random.split(next(keys), 8))
        h_tilde = jax.random.normal(next(kb), (B, hidden_size), jnp.float32)
        new_h = jax.random.normal(next(kb), (B, hidden_size), jnp.float32)
        alpha = jax.random.normal(next(kb), (B, 6), jnp.float32)
        new_cov = jax.random.normal(next(kb), (B, hidden_size), jnp.float32)
        mask = jax.random.bernoulli(next(kb), 0.25, (B,))

        out = regressor_single_head_forward(new_h, alpha, new_cov, h_tilde,
                                            mask, weights, biases, **kw)
        out = jax.block_until_ready(out)
        _, _, q_value, _ = out
        assert q_value.shape == (B,)

        ref = _mlp_reference(h_tilde, weights, biases)
        ref = jnp.where(mask, jnp.float32(1.0e9), ref)
        # bf16 MXU operands + f32 accumulation -> loose tolerance vs f32 ref.
        assert jnp.allclose(q_value, ref, atol=3e-2, rtol=3e-2), (B, q_value, ref)

    # Module-scale batch (B=8), forced through the Pallas kernel (exercises the
    # padding path: 1 packed row -> 8-row tile).
    run_case(8, min_pallas_batch=0)
    # Larger batch exercising a multi-step "parallel" grid (4 tiles of 128
    # packed rows = 1024 batch rows per step, no padding needed).
    run_case(4096, max_rows_per_tile=128)

    print("KERNEL_OK")
</pallas_src>

<mosaic_0001>
module attributes {stable_mosaic.version = 11 : i64} {
  func.func @_q_head_kernel(%arg0: i32, %arg1: memref<8x256xf32, #tpu.memory_space<vmem>>, %arg2: memref<256x128xbf16, #tpu.memory_space<vmem>>, %arg3: memref<1x128xf32, #tpu.memory_space<vmem>>, %arg4: memref<128x64xbf16, #tpu.memory_space<vmem>>, %arg5: memref<1x64xf32, #tpu.memory_space<vmem>>, %arg6: memref<64x8xbf16, #tpu.memory_space<vmem>>, %arg7: memref<1x8xf32, #tpu.memory_space<vmem>>, %arg8: memref<8x8xi8, #tpu.memory_space<vmem>>, %arg9: memref<8x8xf32, #tpu.memory_space<vmem>>) attributes {dimension_semantics = [#tpu.dimension_semantics<parallel>], iteration_bounds = array<i64: 1>, scalar_prefetch = 0 : i64, scratch_operands = 0 : i64, tpu.core_type = #tpu.core_type<tc>, window_params = [{transform_indices = @transform_0, window_bounds = array<i64: 8, 256>}, {pipeline_mode = #tpu.pipeline_mode<synchronous>, transform_indices = @transform_1, window_bounds = array<i64: 256, 128>}, {pipeline_mode = #tpu.pipeline_mode<synchronous>, transform_indices = @transform_2, window_bounds = array<i64: 1, 128>}, {pipeline_mode = #tpu.pipeline_mode<synchronous>, transform_indices = @transform_3, window_bounds = array<i64: 128, 64>}, {pipeline_mode = #tpu.pipeline_mode<synchronous>, transform_indices = @transform_4, window_bounds = array<i64: 1, 64>}, {pipeline_mode = #tpu.pipeline_mode<synchronous>, transform_indices = @transform_5, window_bounds = array<i64: 64, 8>}, {pipeline_mode = #tpu.pipeline_mode<synchronous>, transform_indices = @transform_6, window_bounds = array<i64: 1, 8>}, {transform_indices = @transform_7, window_bounds = array<i64: 8, 8>}, {transform_indices = @transform_8, window_bounds = array<i64: 8, 8>}]} {
    %c0 = arith.constant 0 : index
    %c0_0 = arith.constant 0 : index
    %0 = vector.load %arg1[%c0, %c0_0] : memref<8x256xf32, #tpu.memory_space<vmem>>, vector<8x256xf32>
    %1 = arith.truncf %0 : vector<8x256xf32> to vector<8x256xbf16>
    %c0_1 = arith.constant 0 : index
    %c0_2 = arith.constant 0 : index
    %2 = vector.load %arg2[%c0_1, %c0_2] : memref<256x128xbf16, #tpu.memory_space<vmem>>, vector<256x128xbf16>
    %c0_3 = arith.constant 0 : index
    %c0_4 = arith.constant 0 : index
    %3 = vector.load %arg3[%c0_3, %c0_4] : memref<1x128xf32, #tpu.memory_space<vmem>>, vector<1x128xf32>
    %cst = arith.constant dense<0.000000e+00> : vector<8x128xf32>
    %4 = tpu.matmul %1, %2, %cst {dimension_numbers = #tpu.dot_dimension_numbers<[1], [0], [0], [1], [0, 0, 1, 1], [], []>} : vector<8x256xbf16>, vector<256x128xbf16>, vector<8x128xf32> -> vector<8x128xf32>
    %5 = vector.broadcast %3 : vector<1x128xf32> to vector<8x128xf32>
    %6 = arith.addf %4, %5 : vector<8x128xf32>
    %cst_5 = arith.constant 0.000000e+00 : f32
    %7 = vector.broadcast %cst_5 : f32 to vector<8x128xf32>
    %8 = arith.maximumf %6, %7 : vector<8x128xf32>
    %9 = arith.truncf %8 : vector<8x128xf32> to vector<8x128xbf16>
    %c0_6 = arith.constant 0 : index
    %c0_7 = arith.constant 0 : index
    %10 = vector.load %arg4[%c0_6, %c0_7] : memref<128x64xbf16, #tpu.memory_space<vmem>>, vector<128x64xbf16>
    %c0_8 = arith.constant 0 : index
    %c0_9 = arith.constant 0 : index
    %11 = vector.load %arg5[%c0_8, %c0_9] : memref<1x64xf32, #tpu.memory_space<vmem>>, vector<1x64xf32>
    %cst_10 = arith.constant dense<0.000000e+00> : vector<8x64xf32>
    %12 = tpu.matmul %9, %10, %cst_10 {dimension_numbers = #tpu.dot_dimension_numbers<[1], [0], [0], [1], [0, 0, 1, 1], [], []>} : vector<8x128xbf16>, vector<128x64xbf16>, vector<8x64xf32> -> vector<8x64xf32>
    %13 = vector.broadcast %11 : vector<1x64xf32> to vector<8x64xf32>
    %14 = arith.addf %12, %13 : vector<8x64xf32>
    %cst_11 = arith.constant 0.000000e+00 : f32
    %15 = vector.broadcast %cst_11 : f32 to vector<8x64xf32>
    %16 = arith.maximumf %14, %15 : vector<8x64xf32>
    %17 = arith.truncf %16 : vector<8x64xf32> to vector<8x64xbf16>
    %c0_12 = arith.constant 0 : index
    %c0_13 = arith.constant 0 : index
    %18 = vector.load %arg6[%c0_12, %c0_13] : memref<64x8xbf16, #tpu.memory_space<vmem>>, vector<64x8xbf16>
    %c0_14 = arith.constant 0 : index
    %c0_15 = arith.constant 0 : index
    %19 = vector.load %arg7[%c0_14, %c0_15] : memref<1x8xf32, #tpu.memory_space<vmem>>, vector<1x8xf32>
    %cst_16 = arith.constant dense<0.000000e+00> : vector<8x8xf32>
    %20 = tpu.matmul %17, %18, %cst_16 {dimension_numbers = #tpu.dot_dimension_numbers<[1], [0], [0], [1], [0, 0, 1, 1], [], []>} : vector<8x64xbf16>, vector<64x8xbf16>, vector<8x8xf32> -> vector<8x8xf32>
    %21 = vector.broadcast %19 : vector<1x8xf32> to vector<8x8xf32>
    %22 = arith.addf %20, %21 : vector<8x8xf32>
    %c0_17 = arith.constant 0 : index
    %c0_18 = arith.constant 0 : index
    %23 = vector.load %arg8[%c0_17, %c0_18] : memref<8x8xi8, #tpu.memory_space<vmem>>, vector<8x8xi8>
    %c0_i8 = arith.constant 0 : i8
    %24 = vector.broadcast %c0_i8 : i8 to vector<8x8xi8>
    %25 = arith.cmpi ne, %23, %24 : vector<8x8xi8>
    %cst_19 = arith.constant 1.000000e+09 : f32
    %26 = vector.broadcast %cst_19 : f32 to vector<8x8xf32>
    %27 = arith.select %25, %26, %22 : vector<8x8xi1>, vector<8x8xf32>
    %c0_20 = arith.constant 0 : index
    %c0_21 = arith.constant 0 : index
    %28 = vector.load %arg9[%c0_20, %c0_21] : memref<8x8xf32, #tpu.memory_space<vmem>>, vector<8x8xf32>
    tpu.vector_store %arg9[%c0_20, %c0_21], %27 {strides = array<i32>} : memref<8x8xf32, #tpu.memory_space<vmem>>, vector<8x8xf32>,
    return
  }
  func.func @transform_0(%arg0: i32) -> (i32, i32) {
    %c0_i32 = arith.constant 0 : i32
    %c0_i32_0 = arith.constant 0 : i32
    return %arg0, %c0_i32 : i32, i32
  }
  func.func @transform_1(%arg0: i32) -> (i32, i32) {
    %c0_i32 = arith.constant 0 : i32
    %c0_i32_0 = arith.constant 0 : i32
    %c0_i32_1 = arith.constant 0 : i32
    return %c0_i32, %c0_i32_0 : i32, i32
  }
  func.func @transform_2(%arg0: i32) -> (i32, i32) {
    %c0_i32 = arith.constant 0 : i32
    %c0_i32_0 = arith.constant 0 : i32
    %c0_i32_1 = arith.constant 0 : i32
    return %c0_i32, %c0_i32_0 : i32, i32
  }
  func.func @transform_3(%arg0: i32) -> (i32, i32) {
    %c0_i32 = arith.constant 0 : i32
    %c0_i32_0 = arith.constant 0 : i32
    %c0_i32_1 = arith.constant 0 : i32
    return %c0_i32, %c0_i32_0 : i32, i32
  }
  func.func @transform_4(%arg0: i32) -> (i32, i32) {
    %c0_i32 = arith.constant 0 : i32
    %c0_i32_0 = arith.constant 0 : i32
    %c0_i32_1 = arith.constant 0 : i32
    return %c0_i32, %c0_i32_0 : i32, i32
  }
  func.func @transform_5(%arg0: i32) -> (i32, i32) {
    %c0_i32 = arith.constant 0 : i32
    %c0_i32_0 = arith.constant 0 : i32
    %c0_i32_1 = arith.constant 0 : i32
    return %c0_i32, %c0_i32_0 : i32, i32
  }
  func.func @transform_6(%arg0: i32) -> (i32, i32) {
    %c0_i32 = arith.constant 0 : i32
    %c0_i32_0 = arith.constant 0 : i32
    %c0_i32_1 = arith.constant 0 : i32
    return %c0_i32, %c0_i32_0 : i32, i32
  }
  func.func @transform_7(%arg0: i32) -> (i32, i32) {
    %c0_i32 = arith.constant 0 : i32
    %c0_i32_0 = arith.constant 0 : i32
    return %arg0, %c0_i32 : i32, i32
  }
  func.func @transform_8(%arg0: i32) -> (i32, i32) {
    %c0_i32 = arith.constant 0 : i32
    %c0_i32_0 = arith.constant 0 : i32
    return %arg0, %c0_i32 : i32, i32
  }
}

</mosaic_0001>

<llo_original>
// kernel: tpu_custom_call.1
$region0: #{tpu_custom_call.1}
  #allocation0 [shape = 'u32[]', space=smem, size = 0x4, offset = 0x4, fixed_abs, tag = 'smem constant byte address 0x4 - core index']
  #allocation1 [shape = 'u32[72,128]{1,0:T(1,128)}', space=vmem, size = 0x9000, scoped, tag = 'internal scratch']
  %s0 = inlined_call_operand.hbm [shape: f32[8,256], index: 0, kind: input, shape index: {}]
  %s1 = inlined_call_operand.vmem [shape: bf16[256,128], index: 1, kind: input, shape index: {}]
  %s2 = inlined_call_operand.vmem [shape: f32[1,128], index: 2, kind: input, shape index: {}]
  %s3 = inlined_call_operand.vmem [shape: bf16[128,64], index: 3, kind: input, shape index: {}]
  %s4 = inlined_call_operand.vmem [shape: f32[1,64], index: 4, kind: input, shape index: {}]
  %s5 = inlined_call_operand.vmem [shape: bf16[64,8], index: 5, kind: input, shape index: {}]
  %s6 = inlined_call_operand.vmem [shape: f32[1,8], index: 6, kind: input, shape index: {}]
  %s7 = inlined_call_operand.vmem [shape: s8[8,8], index: 7, kind: input, shape index: {}]
  %s8 = inlined_call_operand.hbm [shape: f32[8,8], index: 8, kind: output, shape index: {}]
  %s9 = sld [smem:[#allocation0]]
  $region46: #{tpu_custom_call.1} parent=0
    _
  %s11 = ssub.s32 1, %s9
  %s12 = scalar_select 0, %s11, %s9
  $region1: #{tpu_custom_call.1} parent=0
    #allocation2 [shape = 'u8[8192]{0}', space=vmem, size = 0x2000, scoped, tag = 'input window, operand 0, single buffered']
    #allocation3 [shape = 's32[1]{0}', space=sflag, size = 0x4, scoped, tag = 'scoped memory for tpu_custom_call.1']
    #allocation4 [shape = 's32[1]{0}', space=sflag, size = 0x4, scoped, tag = 'scoped memory for tpu_custom_call.1']
    #allocation5 [shape = 'u8[4096]{0}', space=vmem, size = 0x1000, scoped, tag = 'output window, operand 0, single buffered']
    %13 = vsyncpa [#allocation3], 0
    %14 = vsyncpa [#allocation4], 0
    // Predicated region
    $region2: #{tpu_custom_call.1} parent=1 // pred_check
      _
    $region3: #{tpu_custom_call.1} parent=1 // pred_check_branch
      %16 = sbr.rel (0) target = $region5
    $region4: #{tpu_custom_call.1} parent=1 // pred_region
      %18 = vsyncadd [#allocation3], 0
      %s20 = sshll.u32 %s0, 4
      %s21 = int_to_ptr.hbm [resolvable:$true] %s20
      %s22 = sshll.u32 [#allocation2], 4
      %s23 = int_to_ptr.vmem [resolvable:$true] %s22
      %25 = dma.hbm_to_vmem [thread:$0]  %s21, 256, %s23, [#allocation3]
    $region5: #{tpu_custom_call.1} parent=1 // pred_fallthru
      _
    // Predicated region
    $region6: #{tpu_custom_call.1} parent=1 // pred_check
      _
    $region7: #{tpu_custom_call.1} parent=1 // pred_check_branch
      %27 = sbr.rel (0) target = $region9
    $region8: #{tpu_custom_call.1} parent=1 // pred_region
      _
    $region9: #{tpu_custom_call.1} parent=1 // pred_fallthru
      _
    // Predicated region
    $region10: #{tpu_custom_call.1} parent=1 // pred_check
      _
    $region11: #{tpu_custom_call.1} parent=1 // pred_check_branch
      %29 = sbr.rel (0) target = $region13
    $region12: #{tpu_custom_call.1} parent=1 // pred_region
      _
    $region13: #{tpu_custom_call.1} parent=1 // pred_fallthru
      _
    // Predicated region
    $region14: #{tpu_custom_call.1} parent=1 // pred_check
      _
    $region15: #{tpu_custom_call.1} parent=1 // pred_check_branch
      %31 = sbr.rel (0) target = $region17
    $region16: #{tpu_custom_call.1} parent=1 // pred_region
      _
    $region17: #{tpu_custom_call.1} parent=1 // pred_fallthru
      _
    // Predicated region
    $region18: #{tpu_custom_call.1} parent=1 // pred_check
      _
    $region19: #{tpu_custom_call.1} parent=1 // pred_check_branch
      %33 = sbr.rel (0) target = $region21
    $region20: #{tpu_custom_call.1} parent=1 // pred_region
      _
    $region21: #{tpu_custom_call.1} parent=1 // pred_fallthru
      _
    // Predicated region
    $region22: #{tpu_custom_call.1} parent=1 // pred_check
      _
    $region23: #{tpu_custom_call.1} parent=1 // pred_check_branch
      %35 = sbr.rel (0) target = $region25
    $region24: #{tpu_custom_call.1} parent=1 // pred_region
      _
    $region25: #{tpu_custom_call.1} parent=1 // pred_fallthru
      _
    // Predicated region
    $region26: #{tpu_custom_call.1} parent=1 // pred_check
      _
    $region27: #{tpu_custom_call.1} parent=1 // pred_check_branch
      %37 = sbr.rel (0) target = $region29
    $region28: #{tpu_custom_call.1} parent=1 // pred_region
      _
    $region29: #{tpu_custom_call.1} parent=1 // pred_fallthru
      _
    // Predicated region
    $region30: #{tpu_custom_call.1} parent=1 // pred_check
      _
    $region31: #{tpu_custom_call.1} parent=1 // pred_check_branch
      %39 = sbr.rel (0) target = $region33
    $region32: #{tpu_custom_call.1} parent=1 // pred_region
      _
    $region33: #{tpu_custom_call.1} parent=1 // pred_fallthru
      _
    // Predicated region
    $region34: #{tpu_custom_call.1} parent=1 // pred_check
      _
    $region35: #{tpu_custom_call.1} parent=1 // pred_check_branch
      %41 = sbr.rel (0) target = $region37
    $region36: #{tpu_custom_call.1} parent=1 // pred_region
      %43 = dma.done [#allocation3], 256
    $region37: #{tpu_custom_call.1} parent=1 // pred_fallthru
      _
    %v47 = vld [vmem:[#allocation2] sm:$0xff]
    %v48 = vld [vmem:[#allocation2 + $0x8] sm:$0xff]
    %v49 = vpack.c.bf16 %v47, %v47
    %v50 = vpack.c.bf16 %v48, %v48
    %v51 = vld [vmem:[%s1] sm:$0xf]
    %v52 = vld [vmem:[%s1 + $0x4] sm:$0xf]
    %v53 = vld [vmem:[%s1 + $0x8] sm:$0xf]
    %v54 = vld [vmem:[%s1 + $0xc] sm:$0xf]
    %v55 = vld [vmem:[%s1 + $0x10] sm:$0xf]
    %v56 = vld [vmem:[%s1 + $0x14] sm:$0xf]
    %v57 = vld [vmem:[%s1 + $0x18] sm:$0xf]
    %v58 = vld [vmem:[%s1 + $0x1c] sm:$0xf]
    %v59 = vld [vmem:[%s1 + $0x20] sm:$0xf]
    %v60 = vld [vmem:[%s1 + $0x24] sm:$0xf]
    %v61 = vld [vmem:[%s1 + $0x28] sm:$0xf]
    %v62 = vld [vmem:[%s1 + $0x2c] sm:$0xf]
    %v63 = vld [vmem:[%s1 + $0x30] sm:$0xf]
    %v64 = vld [vmem:[%s1 + $0x34] sm:$0xf]
    %v65 = vld [vmem:[%s1 + $0x38] sm:$0xf]
    %v66 = vld [vmem:[%s1 + $0x3c] sm:$0xf]
    %v67 = vld [vmem:[%s1 + $0x40] sm:$0xf]
    %v68 = vld [vmem:[%s1 + $0x44] sm:$0xf]
    %v69 = vld [vmem:[%s1 + $0x48] sm:$0xf]
    %v70 = vld [vmem:[%s1 + $0x4c] sm:$0xf]
    %v71 = vld [vmem:[%s1 + $0x50] sm:$0xf]
    %v72 = vld [vmem:[%s1 + $0x54] sm:$0xf]
    %v73 = vld [vmem:[%s1 + $0x58] sm:$0xf]
    %v74 = vld [vmem:[%s1 + $0x5c] sm:$0xf]
    %v75 = vld [vmem:[%s1 + $0x60] sm:$0xf]
    %v76 = vld [vmem:[%s1 + $0x64] sm:$0xf]
    %v77 = vld [vmem:[%s1 + $0x68] sm:$0xf]
    %v78 = vld [vmem:[%s1 + $0x6c] sm:$0xf]
    %v79 = vld [vmem:[%s1 + $0x70] sm:$0xf]
    %v80 = vld [vmem:[%s1 + $0x74] sm:$0xf]
    %v81 = vld [vmem:[%s1 + $0x78] sm:$0xf]
    %v82 = vld [vmem:[%s1 + $0x7c] sm:$0xf]
    %v83 = vld [vmem:[%s2] sm:$0x1]
    %v85 = vperm.slane %v83, 0
    %v119 = vunpack.c.l.b16 %v51
    %v120 = vunpack.c.l.b16 %v52
    %v121 = vunpack.c.l.b16 %v53
    %v122 = vunpack.c.l.b16 %v54
    %v123 = vunpack.c.l.b16 %v55
    %v124 = vunpack.c.l.b16 %v56
    %v125 = vunpack.c.l.b16 %v57
    %v126 = vunpack.c.l.b16 %v58
    %v127 = vunpack.c.l.b16 %v59
    %v128 = vunpack.c.l.b16 %v60
    %v129 = vunpack.c.l.b16 %v61
    %v130 = vunpack.c.l.b16 %v62
    %v131 = vunpack.c.l.b16 %v63
    %v132 = vunpack.c.l.b16 %v64
    %v133 = vunpack.c.l.b16 %v65
    %v134 = vunpack.c.l.b16 %v66
    %v135 = vunpack.c.l.b16 %v67
    %v136 = vunpack.c.l.b16 %v68
    %v137 = vunpack.c.l.b16 %v69
    %v138 = vunpack.c.l.b16 %v70
    %v139 = vunpack.c.l.b16 %v71
    %v140 = vunpack.c.l.b16 %v72
    %v141 = vunpack.c.l.b16 %v73
    %v142 = vunpack.c.l.b16 %v74
    %v143 = vunpack.c.l.b16 %v75
    %v144 = vunpack.c.l.b16 %v76
    %v145 = vunpack.c.l.b16 %v77
    %v146 = vunpack.c.l.b16 %v78
    %v147 = vunpack.c.l.b16 %v79
    %v148 = vunpack.c.l.b16 %v80
    %v149 = vunpack.c.l.b16 %v81
    %v150 = vunpack.c.l.b16 %v82
    %v151 = vpack.c.b16 %v120, %v119
    %v152 = vpack.c.b16 %v122, %v121
    %v153 = vpack.c.b16 %v124, %v123
    %v154 = vpack.c.b16 %v126, %v125
    %v155 = vpack.c.b16 %v128, %v127
    %v156 = vpack.c.b16 %v130, %v129
    %v157 = vpack.c.b16 %v132, %v131
    %v158 = vpack.c.b16 %v134, %v133
    %v159 = vpack.c.b16 %v136, %v135
    %v160 = vpack.c.b16 %v138, %v137
    %v161 = vpack.c.b16 %v140, %v139
    %v162 = vpack.c.b16 %v142, %v141
    %v163 = vpack.c.b16 %v144, %v143
    %v164 = vpack.c.b16 %v146, %v145
    %v165 = vpack.c.b16 %v148, %v147
    %v166 = vpack.c.b16 %v150, %v149
    %183 = vmatpush.bf16.msra.mxu0 %v158
    %184 = vmatpush.bf16.msra.mxu0 %v157
    %185 = vmatpush.bf16.msra.mxu0 %v156
    %186 = vmatpush.bf16.msra.mxu0 %v155
    %187 = vmatpush.bf16.msra.mxu0 %v154
    %188 = vmatpush.bf16.msra.mxu0 %v153
    %189 = vmatpush.bf16.msra.mxu0 %v152
    %190 = vmatpush.bf16.msra.mxu0 %v151
    %191 = vmatmul.bf16.gmra.mxu0 %v49
    %v192 = vpop.f32.mrf.mxu0
    %v193 = vadd.f32 %v85, %v192
    %v194 = vpop.f32.mrf.mxu0
    %195 = vdwg.mxu0
    %196 = vmatpush.bf16.msra.mxu0 %v166
    %197 = vmatpush.bf16.msra.mxu0 %v165
    %198 = vmatpush.bf16.msra.mxu0 %v164
    %199 = vmatpush.bf16.msra.mxu0 %v163
    %200 = vmatpush.bf16.msra.mxu0 %v162
    %201 = vmatpush.bf16.msra.mxu0 %v161
    %202 = vmatpush.bf16.msra.mxu0 %v160
    %203 = vmatpush.bf16.msra.mxu0 %v159
    %204 = vmatmul.bf16.gmra.mxu0 %v50
    %v205 = vpop.f32.mrf.mxu0
    %v206 = vadd.f32 %v193, %v205
    %v207 = vpop.f32.mrf.mxu0
    %208 = vdwg.mxu0
    %v209 = vmax.f32 %v206, 0.0
    %v210 = vpack.c.bf16 %v209, %v209
    %v211 = vld [vmem:[%s3] sm:$0xf]
    %v212 = vld [vmem:[%s3 + $0x4] sm:$0xf]
    %v213 = vld [vmem:[%s3 + $0x8] sm:$0xf]
    %v214 = vld [vmem:[%s3 + $0xc] sm:$0xf]
    %v215 = vld [vmem:[%s3 + $0x10] sm:$0xf]
    %v216 = vld [vmem:[%s3 + $0x14] sm:$0xf]
    %v217 = vld [vmem:[%s3 + $0x18] sm:$0xf]
    %v218 = vld [vmem:[%s3 + $0x1c] sm:$0xf]
    %v219 = vld [vmem:[%s3 + $0x20] sm:$0xf]
    %v220 = vld [vmem:[%s3 + $0x24] sm:$0xf]
    %v221 = vld [vmem:[%s3 + $0x28] sm:$0xf]
    %v222 = vld [vmem:[%s3 + $0x2c] sm:$0xf]
    %v223 = vld [vmem:[%s3 + $0x30] sm:$0xf]
    %v224 = vld [vmem:[%s3 + $0x34] sm:$0xf]
    %v225 = vld [vmem:[%s3 + $0x38] sm:$0xf]
    %v226 = vld [vmem:[%s3 + $0x3c] sm:$0xf]
    %v227 = vld [vmem:[%s4] sm:$0x1]
    %v229 = vperm.slane %v227, 0
    %v247 = vunpack.c.l.b16 %v211
    %v248 = vunpack.c.l.b16 %v212
    %v249 = vunpack.c.l.b16 %v213
    %v250 = vunpack.c.l.b16 %v214
    %v251 = vunpack.c.l.b16 %v215
    %v252 = vunpack.c.l.b16 %v216
    %v253 = vunpack.c.l.b16 %v217
    %v254 = vunpack.c.l.b16 %v218
    %v255 = vunpack.c.l.b16 %v219
    %v256 = vunpack.c.l.b16 %v220
    %v257 = vunpack.c.l.b16 %v221
    %v258 = vunpack.c.l.b16 %v222
    %v259 = vunpack.c.l.b16 %v223
    %v260 = vunpack.c.l.b16 %v224
    %v261 = vunpack.c.l.b16 %v225
    %v262 = vunpack.c.l.b16 %v226
    %v263 = vpack.c.b16 %v248, %v247
    %v264 = vpack.c.b16 %v250, %v249
    %v265 = vpack.c.b16 %v252, %v251
    %v266 = vpack.c.b16 %v254, %v253
    %v267 = vpack.c.b16 %v256, %v255
    %v268 = vpack.c.b16 %v258, %v257
    %v269 = vpack.c.b16 %v260, %v259
    %v270 = vpack.c.b16 %v262, %v261
    %279 = vmatpush.bf16.msra.mxu0 %v270
    %280 = vmatpush.bf16.msra.mxu0 %v269
    %281 = vmatpush.bf16.msra.mxu0 %v268
    %282 = vmatpush.bf16.msra.mxu0 %v267
    %283 = vmatpush.bf16.msra.mxu0 %v266
    %284 = vmatpush.bf16.msra.mxu0 %v265
    %285 = vmatpush.bf16.msra.mxu0 %v264
    %286 = vmatpush.bf16.msra.mxu0 %v263
    %287 = vmatmul.bf16.gmra.mxu0 %v210
    %v288 = vpop.f32.mrf.mxu0
    %v289 = vadd.f32 %v229, %v288
    %v290 = vpop.f32.mrf.mxu0
    %291 = vdwg.mxu0
    %v292 = vmax.f32 %v289, 0.0
    %v293 = vpack.c.bf16 %v292, %v292
    %v294 = vld [vmem:[%s5] sm:$0xf]
    %v295 = vld [vmem:[%s5 + $0x4] sm:$0xf]
    %v296 = vld [vmem:[%s5 + $0x8] sm:$0xf]
    %v297 = vld [vmem:[%s5 + $0xc] sm:$0xf]
    %v298 = vld [vmem:[%s5 + $0x10] sm:$0xf]
    %v299 = vld [vmem:[%s5 + $0x14] sm:$0xf]
    %v300 = vld [vmem:[%s5 + $0x18] sm:$0xf]
    %v301 = vld [vmem:[%s5 + $0x1c] sm:$0xf]
    %v302 = vld [vmem:[%s6] sm:$0x1]
    %v304 = vperm.slane %v302, 0
    %v314 = vunpack.c.l.b16 %v294
    %v315 = vunpack.c.l.b16 %v295
    %v316 = vunpack.c.l.b16 %v296
    %v317 = vunpack.c.l.b16 %v297
    %v318 = vunpack.c.l.b16 %v298
    %v319 = vunpack.c.l.b16 %v299
    %v320 = vunpack.c.l.b16 %v300
    %v321 = vunpack.c.l.b16 %v301
    %v322 = vpack.c.b16 %v315, %v314
    %v323 = vpack.c.b16 %v317, %v316
    %v324 = vpack.c.b16 %v319, %v318
    %v325 = vpack.c.b16 %v321, %v320
    %vm330 = vcmask 523264
    %v332 = vsel %vm330, %v293, 0
    %334 = vmatpush.bf16.msra.mxu0 0
    %335 = vmatpush.bf16.msra.mxu0 0
    %336 = vmatpush.bf16.msra.mxu0 0
    %337 = vmatpush.bf16.msra.mxu0 0
    %338 = vmatpush.bf16.msra.mxu0 %v325
    %339 = vmatpush.bf16.msra.mxu0 %v324
    %340 = vmatpush.bf16.msra.mxu0 %v323
    %341 = vmatpush.bf16.msra.mxu0 %v322
    %342 = vmatmul.bf16.gmra.mxu0 %v332
    %v343 = vpop.f32.mrf.mxu0
    %v344 = vadd.f32 %v304, %v343
    %v345 = vpop.f32.mrf.mxu0
    %346 = vdwg.mxu0
    %v347 = vld [vmem:[%s7] sm:$0x3]
    %vm348 = vnez %v347
    %v349 = vsel %vm348, 16843009, 0
    %v350 = vunpack.c.0.s8 %v349
    %vm351 = vcmp.ne.s32.totalorder %v350, 0
    %v352 = vsel %vm351, 1e+09, %v344
    %vm353 = vcmask 64512
    %354 = vst.msk [vmem:[#allocation5] sm:$0xff] %vm353, %v352
    // Predicated region
    $region38: #{tpu_custom_call.1} parent=1 // pred_check
      _
    $region39: #{tpu_custom_call.1} parent=1 // pred_check_branch
      %356 = sbr.rel (0) target = $region41
    $region40: #{tpu_custom_call.1} parent=1 // pred_region
      %358 = vsyncadd [#allocation4], 0
      %s360 = sshll.u32 [#allocation5], 4
      %s361 = int_to_ptr.vmem [resolvable:$true] %s360
      %s362 = sshll.u32 %s8, 4
      %s363 = int_to_ptr.hbm [resolvable:$true] %s362
      %365 = dma.vmem_to_hbm [thread:$0]  %s361, 128, %s363, [#allocation4]
    $region41: #{tpu_custom_call.1} parent=1 // pred_fallthru
      _
    // Predicated region
    $region42: #{tpu_custom_call.1} parent=1 // pred_check
      _
    $region43: #{tpu_custom_call.1} parent=1 // pred_check_branch
      %367 = sbr.rel (0) target = $region45
    $region44: #{tpu_custom_call.1} parent=1 // pred_region
      %369 = dma.done [#allocation4], 128
    $region45: #{tpu_custom_call.1} parent=1 // pred_fallthru
      _
    %370 = vsyncpa [#allocation3], 1
    %371 = vsyncpa [#allocation4], 1

</llo_original>
